<compile_context>
chip_gen: v7x
topology: tpu7x:2x2x1
jax: 0.10.0
libtpu: 0.0.40
codegen_flags: <defaults>
</compile_context>

<pallas_src>
import functools

import jax
import jax.numpy as jnp
from jax.experimental import pallas as pl
from jax.experimental.pallas import tpu as pltpu


def _round_up(a: int, b: int) -> int:
    return (a + b - 1) // b * b


def normface_kernel(x_ref, w_ref, invw_ref, label_ref, cos_ref, loss_ref,
                    invx_ref, m_ref, l_ref, t_ref, *, n_classes, scale):
    """One (batch_tile, class_tile) grid step of the NormFace forward pass."""
    j = pl.program_id(1)
    n_j = pl.num_programs(1)

    # ---- per-batch-tile init (first class tile) --------------------------
    @pl.when(j == 0)
    def _init():
        x32 = x_ref[...].astype(jnp.float32)                       # (tB, D)
        row_norm = jnp.sqrt(jnp.sum(x32 * x32, axis=1, keepdims=True))
        # F.normalize semantics: x / max(||x||, 1e-12).  EUP reciprocal (free slot).
        invx_ref[...] = pl.reciprocal(jnp.maximum(row_norm, 1e-12), approx=True)
        m_ref[...] = jnp.full_like(m_ref, -jnp.inf)
        l_ref[...] = jnp.zeros_like(l_ref)
        t_ref[...] = jnp.zeros_like(t_ref)

    # ---- MXU: raw = x @ W on bf16 operands, f32 accumulation --------------
    raw = jnp.dot(x_ref[...].astype(jnp.bfloat16), w_ref[...],
                  preferred_element_type=jnp.float32)               # (tB, tC)

    # Both L2 normalizations folded into a (tB, tC) post-scale.
    cosine = raw * invx_ref[...] * invw_ref[...]
    cos_ref[...] = cosine.astype(cos_ref.dtype)

    logits = scale * cosine                                          # s * cosine

    tB, tC = cosine.shape
    class_ids = j * tC + jax.lax.broadcasted_iota(jnp.int32, (tB, tC), 1)
    valid = class_ids < n_classes                # mask lane padding of the class dim
    masked = jnp.where(valid, logits, -1e30)

    # Target-logit accumulation (labels are always < n_classes, so never padded).
    onehot = class_ids == label_ref[...]                             # (tB, tC)
    t_ref[...] += jnp.sum(jnp.where(onehot, logits, 0.0), axis=1, keepdims=True)

    # Online softmax: running max / running sum(exp).
    m_prev = m_ref[...]
    m_new = jnp.maximum(m_prev, jnp.max(masked, axis=1, keepdims=True))
    alpha = jnp.exp(m_prev - m_new)
    l_ref[...] = alpha * l_ref[...] + jnp.sum(jnp.exp(masked - m_new),
                                              axis=1, keepdims=True)
    m_ref[...] = m_new

    # ---- finalize per-row cross-entropy on the last class tile ------------
    @pl.when(j == n_j - 1)
    def _finalize():
        lse = m_ref[...] + jnp.log(l_ref[...])
        loss_ref[...] = lse - t_ref[...]


def normface_forward(x, weight, label, *, s=16.0, tile_b=128, tile_c=512):
    """Returns (cosine (B, C) f32, scalar mean cross-entropy loss)."""
    B, D = x.shape
    C = weight.shape[1]

    # Batch-invariant column norms of W in f32 (cacheable by the caller).
    w32 = weight.astype(jnp.float32)
    w_norm = jnp.sqrt(jnp.sum(w32 * w32, axis=0, keepdims=True))      # (1, C)
    inv_w = 1.0 / jnp.maximum(w_norm, 1e-12)

    # Tile-aligned, lane/sublane-dense padded shapes.
    tB = min(tile_b, _round_up(B, 8))
    tC = min(tile_c, _round_up(C, 128))
    B_pad = _round_up(B, tB)
    C_pad = _round_up(C, tC)

    xp = jnp.zeros((B_pad, D), jnp.float32).at[:B, :].set(x.astype(jnp.float32))
    wp = jnp.zeros((D, C_pad), jnp.bfloat16).at[:, :C].set(w32.astype(jnp.bfloat16))
    invwp = jnp.zeros((1, C_pad), jnp.float32).at[:, :C].set(inv_w)
    lp = jnp.zeros((B_pad, 1), jnp.int32).at[:B, 0].set(label.astype(jnp.int32))

    grid = (B_pad // tB, C_pad // tC)

    cost = pl.CostEstimate(
        flops=2 * B_pad * D * C_pad,
        transcendentals=B_pad * C_pad,
        bytes_accessed=(xp.size * 4 + wp.size * 2 + invwp.size * 4 + lp.size * 4
                        + B_pad * C_pad * 4 + B_pad * 4),
    )

    kernel = functools.partial(normface_kernel, n_classes=C, scale=float(s))

    cosine_pad, per_row_loss = pl.pallas_call(
        kernel,
        out_shape=(
            jax.ShapeDtypeStruct((B_pad, C_pad), jnp.float32),
            jax.ShapeDtypeStruct((B_pad, 1), jnp.float32),
        ),
        grid_spec=pltpu.PrefetchScalarGridSpec(
            num_scalar_prefetch=0,
            grid=grid,
            in_specs=[
                pl.BlockSpec((tB, D), lambda i, j: (i, 0)),   # x tile (resident over j)
                pl.BlockSpec((D, tC), lambda i, j: (0, j)),   # streamed weight tile (bf16)
                pl.BlockSpec((1, tC), lambda i, j: (0, j)),   # 1/||w_col||
                pl.BlockSpec((tB, 1), lambda i, j: (i, 0)),   # labels
            ],
            out_specs=(
                pl.BlockSpec((tB, tC), lambda i, j: (i, j)),  # cosine (lane-dense)
                pl.BlockSpec((tB, 1), lambda i, j: (i, 0)),   # per-row CE loss
            ),
            scratch_shapes=[
                pltpu.VMEM((tB, 1), jnp.float32),   # 1/||x_row||
                pltpu.VMEM((tB, 1), jnp.float32),   # running max
                pltpu.VMEM((tB, 1), jnp.float32),   # running sum(exp)
                pltpu.VMEM((tB, 1), jnp.float32),   # running target logit
            ],
        ),
        compiler_params=pltpu.CompilerParams(
            dimension_semantics=("parallel", "arbitrary"),
            vmem_limit_bytes=32 * 1024 * 1024,     # safe on v7x's 64 MiB VMEM
        ),
        cost_estimate=cost,
    )(xp, wp, invwp, lp)

    cosine = cosine_pad[:B, :C]
    loss = jnp.sum(per_row_loss[:B, 0]) / B
    return cosine, loss


def init_normface_weight(key, n_output, n_classes):
    # Mirrors: Tensor(n_output, n_classes); xavier_uniform_ (overwritten);
    #          .uniform_(-1, 1).renorm_(2, 1, 1e-5).mul_(1e5)
    w = jax.random.uniform(key, (n_output, n_classes),
                           minval=-1.0, maxval=1.0, dtype=jnp.float32)
    col_norm = jnp.sqrt(jnp.sum(w * w, axis=0, keepdims=True))
    scale = jnp.where(col_norm > 1e-5, 1e-5 / (col_norm + 1e-7), 1.0)
    return w * scale * 1e5


def normface_reference(x, weight, label, s=16.0):
    x = x.astype(jnp.float32)
    w = weight.astype(jnp.float32)
    xn = x / jnp.maximum(jnp.sqrt(jnp.sum(x * x, axis=1, keepdims=True)), 1e-12)
    wn = w / jnp.maximum(jnp.sqrt(jnp.sum(w * w, axis=0, keepdims=True)), 1e-12)
    cosine = xn @ wn
    logits = s * cosine
    lse = jax.nn.logsumexp(logits, axis=1)
    tgt = jnp.take_along_axis(logits, label[:, None], axis=1)[:, 0]
    return cosine, jnp.mean(lse - tgt)


if __name__ == "__main__":
    B, D, C = 8, 32, 16  # batch, n_output (feature dim), n_classes

    key = jax.random.PRNGKey(0)
    kx, kw, kl = jax.random.split(key, 3)

    x = jax.random.normal(kx, (B, D), dtype=jnp.float32)
    weight = init_normface_weight(kw, D, C)
    label = jax.random.randint(kl, (B,), 0, C, dtype=jnp.int32)

    fwd = jax.jit(normface_forward)
    cosine, loss = fwd(x, weight, label)
    jax.block_until_ready((cosine, loss))

    assert cosine.shape == (B, C)
    assert loss.shape == ()
    assert bool(jnp.all(jnp.isfinite(cosine))) and bool(jnp.isfinite(loss))

    # Loose sanity check vs pure-JAX reference (kernel uses bf16 MXU operands).
    ref_cos, ref_loss = normface_reference(x, weight, label)
    assert bool(jnp.allclose(cosine, ref_cos, atol=1e-1)), "cosine mismatch"
    assert bool(jnp.allclose(loss, ref_loss, atol=5e-1)), "loss mismatch"

    print("KERNEL_OK")
</pallas_src>

<mosaic_0001>
module attributes {stable_mosaic.version = 11 : i64} {
  func.func @normface_kernel(%arg0: i32, %arg1: i32, %arg2: memref<8x32xf32, #tpu.memory_space<vmem>>, %arg3: memref<32x128xbf16, #tpu.memory_space<vmem>>, %arg4: memref<1x128xf32, #tpu.memory_space<vmem>>, %arg5: memref<8x1xi32, #tpu.memory_space<vmem>>, %arg6: memref<8x128xf32, #tpu.memory_space<vmem>>, %arg7: memref<8x1xf32, #tpu.memory_space<vmem>>, %arg8: memref<8x1xf32, #tpu.memory_space<vmem>>, %arg9: memref<8x1xf32, #tpu.memory_space<vmem>>, %arg10: memref<8x1xf32, #tpu.memory_space<vmem>>, %arg11: memref<8x1xf32, #tpu.memory_space<vmem>>) attributes {dimension_semantics = [#tpu.dimension_semantics<parallel>, #tpu.dimension_semantics<arbitrary>], iteration_bounds = array<i64: 1, 1>, scalar_prefetch = 0 : i64, scratch_operands = 4 : i64, tpu.core_type = #tpu.core_type<tc>, window_params = [{transform_indices = @transform_0, window_bounds = array<i64: 8, 32>}, {transform_indices = @transform_1, window_bounds = array<i64: 32, 128>}, {transform_indices = @transform_2, window_bounds = array<i64: 1, 128>}, {transform_indices = @transform_3, window_bounds = array<i64: 8, 1>}, {transform_indices = @transform_4, window_bounds = array<i64: 8, 128>}, {transform_indices = @transform_5, window_bounds = array<i64: 8, 1>}]} {
    %c0_i32 = arith.constant 0 : i32
    %0 = arith.cmpi eq, %arg1, %c0_i32 : i32
    %1 = arith.extui %0 : i1 to i32
    %c0_i32_0 = arith.constant 0 : i32
    %2 = arith.cmpi ne, %1, %c0_i32_0 : i32
    scf.if %2 {
      %c0_32 = arith.constant 0 : index
      %c0_33 = arith.constant 0 : index
      %53 = vector.load %arg2[%c0_32, %c0_33] : memref<8x32xf32, #tpu.memory_space<vmem>>, vector<8x32xf32>
      %54 = arith.mulf %53, %53 : vector<8x32xf32>
      %cst_34 = arith.constant dense<0.000000e+00> : vector<8xf32>
      %55 = vector.multi_reduction <add>, %54, %cst_34 [1] : vector<8x32xf32> to vector<8xf32>
      %56 = vector.shape_cast %55 : vector<8xf32> to vector<8x1xf32>
      %57 = math.sqrt %56 : vector<8x1xf32>
      %cst_35 = arith.constant 9.99999996E-13 : f32
      %58 = vector.broadcast %cst_35 : f32 to vector<8x1xf32>
      %59 = arith.maximumf %57, %58 : vector<8x1xf32>
      %60 = tpu.reciprocal %59 {approx = true} : vector<8x1xf32> -> vector<8x1xf32>
      %c0_36 = arith.constant 0 : index
      %c0_37 = arith.constant 0 : index
      %61 = vector.load %arg8[%c0_36, %c0_37] : memref<8x1xf32, #tpu.memory_space<vmem>>, vector<8x1xf32>
      tpu.vector_store %arg8[%c0_36, %c0_37], %60 {strides = array<i32>} : memref<8x1xf32, #tpu.memory_space<vmem>>, vector<8x1xf32>,
      %cst_38 = arith.constant 0xFF800000 : f32
      %62 = vector.broadcast %cst_38 : f32 to vector<8x1xf32>
      %c0_39 = arith.constant 0 : index
      %c0_40 = arith.constant 0 : index
      %63 = vector.load %arg9[%c0_39, %c0_40] : memref<8x1xf32, #tpu.memory_space<vmem>>, vector<8x1xf32>
      tpu.vector_store %arg9[%c0_39, %c0_40], %62 {strides = array<i32>} : memref<8x1xf32, #tpu.memory_space<vmem>>, vector<8x1xf32>,
      %cst_41 = arith.constant 0.000000e+00 : f32
      %64 = vector.broadcast %cst_41 : f32 to vector<8x1xf32>
      %c0_42 = arith.constant 0 : index
      %c0_43 = arith.constant 0 : index
      %65 = vector.load %arg10[%c0_42, %c0_43] : memref<8x1xf32, #tpu.memory_space<vmem>>, vector<8x1xf32>
      tpu.vector_store %arg10[%c0_42, %c0_43], %64 {strides = array<i32>} : memref<8x1xf32, #tpu.memory_space<vmem>>, vector<8x1xf32>,
      %cst_44 = arith.constant 0.000000e+00 : f32
      %66 = vector.broadcast %cst_44 : f32 to vector<8x1xf32>
      %c0_45 = arith.constant 0 : index
      %c0_46 = arith.constant 0 : index
      %67 = vector.load %arg11[%c0_45, %c0_46] : memref<8x1xf32, #tpu.memory_space<vmem>>, vector<8x1xf32>
      tpu.vector_store %arg11[%c0_45, %c0_46], %66 {strides = array<i32>} : memref<8x1xf32, #tpu.memory_space<vmem>>, vector<8x1xf32>,
    } else {
    }
    %c0 = arith.constant 0 : index
    %c0_1 = arith.constant 0 : index
    %3 = vector.load %arg2[%c0, %c0_1] : memref<8x32xf32, #tpu.memory_space<vmem>>, vector<8x32xf32>
    %4 = arith.truncf %3 : vector<8x32xf32> to vector<8x32xbf16>
    %c0_2 = arith.constant 0 : index
    %c0_3 = arith.constant 0 : index
    %5 = vector.load %arg3[%c0_2, %c0_3] : memref<32x128xbf16, #tpu.memory_space<vmem>>, vector<32x128xbf16>
    %cst = arith.constant dense<0.000000e+00> : vector<8x128xf32>
    %6 = tpu.matmul %4, %5, %cst {dimension_numbers = #tpu.dot_dimension_numbers<[1], [0], [0], [1], [0, 0, 1, 1], [], []>} : vector<8x32xbf16>, vector<32x128xbf16>, vector<8x128xf32> -> vector<8x128xf32>
    %c0_4 = arith.constant 0 : index
    %c0_5 = arith.constant 0 : index
    %7 = vector.load %arg8[%c0_4, %c0_5] : memref<8x1xf32, #tpu.memory_space<vmem>>, vector<8x1xf32>
    %8 = vector.broadcast %7 : vector<8x1xf32> to vector<8x128xf32>
    %9 = arith.mulf %6, %8 : vector<8x128xf32>
    %c0_6 = arith.constant 0 : index
    %c0_7 = arith.constant 0 : index
    %10 = vector.load %arg4[%c0_6, %c0_7] : memref<1x128xf32, #tpu.memory_space<vmem>>, vector<1x128xf32>
    %11 = vector.broadcast %10 : vector<1x128xf32> to vector<8x128xf32>
    %12 = arith.mulf %9, %11 : vector<8x128xf32>
    %c0_8 = arith.constant 0 : index
    %c0_9 = arith.constant 0 : index
    %13 = vector.load %arg6[%c0_8, %c0_9] : memref<8x128xf32, #tpu.memory_space<vmem>>, vector<8x128xf32>
    tpu.vector_store %arg6[%c0_8, %c0_9], %12 {strides = array<i32>} : memref<8x128xf32, #tpu.memory_space<vmem>>, vector<8x128xf32>,
    %cst_10 = arith.constant 1.600000e+01 : f32
    %14 = vector.broadcast %cst_10 : f32 to vector<8x128xf32>
    %15 = arith.mulf %14, %12 : vector<8x128xf32>
    %c128_i32 = arith.constant 128 : i32
    %16 = arith.muli %arg1, %c128_i32 : i32
    %17 = tpu.iota {dimensions = array<i32: 1>} : vector<8x128xi32>
    %18 = vector.broadcast %16 : i32 to vector<8x128xi32>
    %19 = arith.addi %18, %17 : vector<8x128xi32>
    %c16_i32 = arith.constant 16 : i32
    %20 = vector.broadcast %c16_i32 : i32 to vector<8x128xi32>
    %21 = arith.cmpi slt, %19, %20 : vector<8x128xi32>
    %cst_11 = arith.constant -1.000000e+30 : f32
    %22 = vector.broadcast %cst_11 : f32 to vector<8x128xf32>
    %23 = arith.select %21, %15, %22 : vector<8x128xi1>, vector<8x128xf32>
    %c0_12 = arith.constant 0 : index
    %c0_13 = arith.constant 0 : index
    %24 = vector.load %arg5[%c0_12, %c0_13] : memref<8x1xi32, #tpu.memory_space<vmem>>, vector<8x1xi32>
    %25 = vector.broadcast %24 : vector<8x1xi32> to vector<8x128xi32>
    %26 = arith.cmpi eq, %19, %25 : vector<8x128xi32>
    %c0_14 = arith.constant 0 : index
    %c0_15 = arith.constant 0 : index
    %27 = vector.load %arg11[%c0_14, %c0_15] : memref<8x1xf32, #tpu.memory_space<vmem>>, vector<8x1xf32>
    %cst_16 = arith.constant 0.000000e+00 : f32
    %28 = vector.broadcast %cst_16 : f32 to vector<8x128xf32>
    %29 = arith.select %26, %15, %28 : vector<8x128xi1>, vector<8x128xf32>
    %cst_17 = arith.constant dense<0.000000e+00> : vector<8xf32>
    %30 = vector.multi_reduction <add>, %29, %cst_17 [1] : vector<8x128xf32> to vector<8xf32>
    %31 = vector.shape_cast %30 : vector<8xf32> to vector<8x1xf32>
    %32 = arith.addf %27, %31 : vector<8x1xf32>
    %c0_18 = arith.constant 0 : index
    %c0_19 = arith.constant 0 : index
    %33 = vector.load %arg11[%c0_18, %c0_19] : memref<8x1xf32, #tpu.memory_space<vmem>>, vector<8x1xf32>
    tpu.vector_store %arg11[%c0_18, %c0_19], %32 {strides = array<i32>} : memref<8x1xf32, #tpu.memory_space<vmem>>, vector<8x1xf32>,
    %c0_20 = arith.constant 0 : index
    %c0_21 = arith.constant 0 : index
    %34 = vector.load %arg9[%c0_20, %c0_21] : memref<8x1xf32, #tpu.memory_space<vmem>>, vector<8x1xf32>
    %cst_22 = arith.constant dense<0xFF800000> : vector<8xf32>
    %35 = vector.multi_reduction <maximumf>, %23, %cst_22 [1] : vector<8x128xf32> to vector<8xf32>
    %36 = vector.shape_cast %35 : vector<8xf32> to vector<8x1xf32>
    %37 = arith.maximumf %34, %36 : vector<8x1xf32>
    %38 = arith.subf %34, %37 : vector<8x1xf32>
    %39 = math.exp %38 : vector<8x1xf32>
    %c0_23 = arith.constant 0 : index
    %c0_24 = arith.constant 0 : index
    %40 = vector.load %arg10[%c0_23, %c0_24] : memref<8x1xf32, #tpu.memory_space<vmem>>, vector<8x1xf32>
    %41 = arith.mulf %39, %40 : vector<8x1xf32>
    %42 = vector.broadcast %37 : vector<8x1xf32> to vector<8x128xf32>
    %43 = arith.subf %23, %42 : vector<8x128xf32>
    %44 = math.exp %43 : vector<8x128xf32>
    %cst_25 = arith.constant dense<0.000000e+00> : vector<8xf32>
    %45 = vector.multi_reduction <add>, %44, %cst_25 [1] : vector<8x128xf32> to vector<8xf32>
    %46 = vector.shape_cast %45 : vector<8xf32> to vector<8x1xf32>
    %47 = arith.addf %41, %46 : vector<8x1xf32>
    %c0_26 = arith.constant 0 : index
    %c0_27 = arith.constant 0 : index
    %48 = vector.load %arg10[%c0_26, %c0_27] : memref<8x1xf32, #tpu.memory_space<vmem>>, vector<8x1xf32>
    tpu.vector_store %arg10[%c0_26, %c0_27], %47 {strides = array<i32>} : memref<8x1xf32, #tpu.memory_space<vmem>>, vector<8x1xf32>,
    %c0_28 = arith.constant 0 : index
    %c0_29 = arith.constant 0 : index
    %49 = vector.load %arg9[%c0_28, %c0_29] : memref<8x1xf32, #tpu.memory_space<vmem>>, vector<8x1xf32>
    tpu.vector_store %arg9[%c0_28, %c0_29], %37 {strides = array<i32>} : memref<8x1xf32, #tpu.memory_space<vmem>>, vector<8x1xf32>,
    %c0_i32_30 = arith.constant 0 : i32
    %50 = arith.cmpi eq, %arg1, %c0_i32_30 : i32
    %51 = arith.extui %50 : i1 to i32
    %c0_i32_31 = arith.constant 0 : i32
    %52 = arith.cmpi ne, %51, %c0_i32_31 : i32
    scf.if %52 {
      %c0_32 = arith.constant 0 : index
      %c0_33 = arith.constant 0 : index
      %53 = vector.load %arg9[%c0_32, %c0_33] : memref<8x1xf32, #tpu.memory_space<vmem>>, vector<8x1xf32>
      %c0_34 = arith.constant 0 : index
      %c0_35 = arith.constant 0 : index
      %54 = vector.load %arg10[%c0_34, %c0_35] : memref<8x1xf32, #tpu.memory_space<vmem>>, vector<8x1xf32>
      %55 = math.log %54 : vector<8x1xf32>
      %56 = arith.addf %53, %55 : vector<8x1xf32>
      %c0_36 = arith.constant 0 : index
      %c0_37 = arith.constant 0 : index
      %57 = vector.load %arg11[%c0_36, %c0_37] : memref<8x1xf32, #tpu.memory_space<vmem>>, vector<8x1xf32>
      %58 = arith.subf %56, %57 : vector<8x1xf32>
      %c0_38 = arith.constant 0 : index
      %c0_39 = arith.constant 0 : index
      %59 = vector.load %arg7[%c0_38, %c0_39] : memref<8x1xf32, #tpu.memory_space<vmem>>, vector<8x1xf32>
      tpu.vector_store %arg7[%c0_38, %c0_39], %58 {strides = array<i32>} : memref<8x1xf32, #tpu.memory_space<vmem>>, vector<8x1xf32>,
    } else {
    }
    return
  }
  func.func @transform_0(%arg0: i32, %arg1: i32) -> (i32, i32) {
    %c0_i32 = arith.constant 0 : i32
    %c0_i32_0 = arith.constant 0 : i32
    return %arg0, %c0_i32 : i32, i32
  }
  func.func @transform_1(%arg0: i32, %arg1: i32) -> (i32, i32) {
    %c0_i32 = arith.constant 0 : i32
    %c0_i32_0 = arith.constant 0 : i32
    return %c0_i32, %arg1 : i32, i32
  }
  func.func @transform_2(%arg0: i32, %arg1: i32) -> (i32, i32) {
    %c0_i32 = arith.constant 0 : i32
    %c0_i32_0 = arith.constant 0 : i32
    return %c0_i32, %arg1 : i32, i32
  }
  func.func @transform_3(%arg0: i32, %arg1: i32) -> (i32, i32) {
    %c0_i32 = arith.constant 0 : i32
    %c0_i32_0 = arith.constant 0 : i32
    return %arg0, %c0_i32 : i32, i32
  }
  func.func @transform_4(%arg0: i32, %arg1: i32) -> (i32, i32) {
    %c0_i32 = arith.constant 0 : i32
    return %arg0, %arg1 : i32, i32
  }
  func.func @transform_5(%arg0: i32, %arg1: i32) -> (i32, i32) {
    %c0_i32 = arith.constant 0 : i32
    %c0_i32_0 = arith.constant 0 : i32
    return %arg0, %c0_i32 : i32, i32
  }
}

</mosaic_0001>

<llo_original>
// kernel: normface_forward.1
$region0: #{normface_forward.1}
  #allocation0 [shape = 'u32[]', space=smem, size = 0x4, offset = 0x4, fixed_abs, tag = 'smem constant byte address 0x4 - core index']
  #allocation1 [shape = 'u32[144,128]{1,0:T(1,128)}', space=vmem, size = 0x12000, scoped, tag = 'internal scratch']
  #allocation2 [shape = 'f32[8,1]{1,0:T(8,128)}', space=vmem, size = 0x1000, scoped, tag = 'scratch operand']
  #allocation3 [shape = 'f32[8,1]{1,0:T(8,128)}', space=vmem, size = 0x1000, scoped, tag = 'scratch operand']
  #allocation4 [shape = 'f32[8,1]{1,0:T(8,128)}', space=vmem, size = 0x1000, scoped, tag = 'scratch operand']
  #allocation5 [shape = 'f32[8,1]{1,0:T(8,128)}', space=vmem, size = 0x1000, scoped, tag = 'scratch operand']
  %s0 = inlined_call_operand.vmem [shape: f32[8,32], index: 0, kind: input, shape index: {}]
  %s1 = inlined_call_operand.vmem [shape: bf16[32,128], index: 1, kind: input, shape index: {}]
  %s2 = inlined_call_operand.vmem [shape: f32[1,128], index: 2, kind: input, shape index: {}]
  %s3 = inlined_call_operand.vmem [shape: s32[8,1], index: 3, kind: input, shape index: {}]
  %s4 = inlined_call_operand.hbm [shape: f32[8,128], index: 4, kind: output, shape index: {0}]
  %s5 = inlined_call_operand.vmem [shape: f32[8,1], index: 5, kind: output, shape index: {1}]
  %6 = xla_tuple %s4, %s5
  %s7 = sld [smem:[#allocation0]]
  $region42: #{normface_forward.1} parent=0
    _
  %s9 = ssub.s32 1, %s7
  %s10 = scalar_select 0, %s9, %s7
  $region1: #{normface_forward.1} parent=0
    #allocation6 [shape = 'u8[4096]{0}', space=vmem, size = 0x1000, scoped, tag = 'output window, operand 0, single buffered']
    #allocation7 [shape = 's32[1]{0}', space=sflag, size = 0x4, scoped, tag = 'scoped memory for normface_forward.1']
    %11 = vsyncpa [#allocation7], 0
    // Predicated region
    $region2: #{normface_forward.1} parent=1 // pred_check
      _
    $region3: #{normface_forward.1} parent=1 // pred_check_branch
      %13 = sbr.rel (0) target = $region5
    $region4: #{normface_forward.1} parent=1 // pred_region
      _
    $region5: #{normface_forward.1} parent=1 // pred_fallthru
      _
    // Predicated region
    $region6: #{normface_forward.1} parent=1 // pred_check
      _
    $region7: #{normface_forward.1} parent=1 // pred_check_branch
      %15 = sbr.rel (0) target = $region9
    $region8: #{normface_forward.1} parent=1 // pred_region
      _
    $region9: #{normface_forward.1} parent=1 // pred_fallthru
      _
    // Predicated region
    $region10: #{normface_forward.1} parent=1 // pred_check
      _
    $region11: #{normface_forward.1} parent=1 // pred_check_branch
      %17 = sbr.rel (0) target = $region13
    $region12: #{normface_forward.1} parent=1 // pred_region
      _
    $region13: #{normface_forward.1} parent=1 // pred_fallthru
      _
    // Predicated region
    $region14: #{normface_forward.1} parent=1 // pred_check
      _
    $region15: #{normface_forward.1} parent=1 // pred_check_branch
      %19 = sbr.rel (0) target = $region17
    $region16: #{normface_forward.1} parent=1 // pred_region
      _
    $region17: #{normface_forward.1} parent=1 // pred_fallthru
      _
    %p21 = scmp.eq.s32.totalorder 0, 0
    // Predicated region
    $region18: #{normface_forward.1} parent=1 // pred_check
      %p22 = pneg %p21
    $region19: #{normface_forward.1} parent=1 // pred_check_branch
      %24 = sbr.rel (%p22) target = $region21
    $region20: #{normface_forward.1} parent=1 // pred_region
      %v25 = vld [vmem:[%s0] sm:$0xff]
      %v26 = vmul.f32 %v25, %v25
      %vm27 = vcmask 261120
      %v28 = vsel %vm27, %v26, 0.0
      %29 = vadd.xlane.f32.xlu0 %v28
      %v30 = vpop.xlane.xlu0 %29
      %v31 = vrsqrt.pop %v30
      %v32 = vmul.f32 %v30, %v31
      %vm33 = vcmp.eq.f32.partialorder %v30, inf
      %v34 = vsel %vm33, %v30, %v32
      %vm35 = vcmp.eq.f32.partialorder %v30, 0.0
      %v36 = vand.u32 %v30, 2147483648
      %v37 = vsel %vm35, %v36, %v34
      %v38 = vmax.f32 %v37, 1e-12
      %v39 = vrcp.pop %v38
      %vm40 = vcmask 7168
      %41 = vst.msk [vmem:[#allocation2] sm:$0xff] %vm40, %v39
      %42 = vst.msk [vmem:[#allocation3] sm:$0xff] %vm40, -inf
      %43 = vst.msk [vmem:[#allocation4] sm:$0xff] %vm40, 0.0
      %44 = vst.msk [vmem:[#allocation5] sm:$0xff] %vm40, 0.0
    $region21: #{normface_forward.1} parent=1 // pred_fallthru
      _
    %v45 = vld [vmem:[%s0] sm:$0xff]
    %v46 = vpack.c.bf16 %v45, %v45
    %v47 = vld [vmem:[%s1] sm:$0xf]
    %v48 = vld [vmem:[%s1 + $0x4] sm:$0xf]
    %v49 = vld [vmem:[%s1 + $0x8] sm:$0xf]
    %v50 = vld [vmem:[%s1 + $0xc] sm:$0xf]
    %v55 = vunpack.c.l.b16 %v47
    %v56 = vunpack.c.l.b16 %v48
    %v57 = vunpack.c.l.b16 %v49
    %v58 = vunpack.c.l.b16 %v50
    %v59 = vpack.c.b16 %v56, %v55
    %v60 = vpack.c.b16 %v58, %v57
    %vm63 = vcmask 261120
    %v65 = vsel %vm63, %v46, 0
    %67 = vmatprep.subr.bf16.mxu0 0
    %68 = vmatpush1.bf16.msra.mxu0 %v59
    %69 = vmatprep.subr.bf16.mxu0 0
    %70 = vmatpush1.bf16.msra.mxu0 %v60
    %71 = vmatprep.subr.bf16.mxu0 0
    %72 = vmatpush1.bf16.msra.mxu0 0
    %73 = vmatprep.subr.bf16.mxu0 0
    %74 = vmatpush1.bf16.msra.mxu0 0
    %75 = vmatprep.subr.bf16.mxu0 0
    %76 = vmatpush1.bf16.msra.mxu0 0
    %77 = vmatprep.subr.bf16.mxu0 0
    %78 = vmatpush1.bf16.msra.mxu0 0
    %79 = vmatprep.subr.bf16.mxu0 0
    %80 = vmatpush1.bf16.msra.mxu0 0
    %81 = vmatprep.subr.bf16.mxu0 0
    %82 = vmatpush1.bf16.msra.mxu0 0
    %83 = vmatprep.subr.bf16.mxu0 0
    %84 = vmatpush1.bf16.msra.mxu0 0
    %85 = vmatprep.subr.bf16.mxu0 0
    %86 = vmatpush1.bf16.msra.mxu0 0
    %87 = vmatprep.subr.bf16.mxu0 0
    %88 = vmatpush1.bf16.msra.mxu0 0
    %89 = vmatprep.subr.bf16.mxu0 0
    %90 = vmatpush1.bf16.msra.mxu0 0
    %91 = vmatprep.subr.bf16.mxu0 0
    %92 = vmatpush1.bf16.msra.mxu0 0
    %93 = vmatprep.subr.bf16.mxu0 0
    %94 = vmatpush1.bf16.msra.mxu0 0
    %95 = vmatprep.subr.bf16.mxu0 0
    %96 = vmatpush1.bf16.msra.mxu0 0
    %97 = vmatprep.subr.bf16.mxu0 0
    %98 = vmatpush1.bf16.msra.mxu0 0
    %99 = vmatprep.mubr.bf16.mxu0 0
    %100 = vmatmul.mubr.bf16.gmra.mrb[0].mxu0 %v65
    %v101 = vpop.f32.mrb[0].mxu0
    %v102 = vadd.f32 0.0, %v101
    %v103 = vpop.f32.mrb[0].mxu0
    %v104 = vpop.f32.mrb[0].mxu0
    %v105 = vpop.f32.mrb[0].mxu0
    %106 = vdwg.mxu0
    %v107 = vld [vmem:[#allocation2] sm:$0xff]
    %109 = vset.pattern.permute.xlu0 0
    %110 = vperm.xlu0 %109, %v107
    %v111 = vpop.permute.xlu0 %110
    %v113 = vmul.f32 %v102, %v111
    %v114 = vld [vmem:[%s2] sm:$0x1]
    %v116 = vlaneseq
    %v117 = vshrl.u32 %v116, 7
    %v118 = vsub.s32 0, %v117
    %v119 = vrot.slane %v114, %v118
    %v121 = vmul.f32 %v113, %v119
    %122 = vst [vmem:[#allocation6] sm:$0xff] %v121
    %v123 = vmul.f32 %v121, 16.0
    %s124 = smul.u32 0, 128
    %v125 = vlaneseq
    %v126 = vand.u32 %v125, 127
    %v127 = vstv %s124
    %v128 = vadd.s32 %v127, %v126
    %vm129 = vcmp.lt.s32.totalorder %v128, 16
    %v130 = vsel %vm129, %v123, -1e+30
    %v131 = vld [vmem:[%s3] sm:$0xff]
    %132 = vset.pattern.permute.xlu0 0
    %133 = vperm.xlu0 %132, %v131
    %v134 = vpop.permute.xlu0 %133
    %vm135 = vcmp.eq.s32.totalorder %v128, %v134
    %v136 = vld [vmem:[#allocation5] sm:$0xff]
    %v137 = vsel %vm135, %v123, 0.0
    %138 = vadd.xlane.f32.xlu0 %v137
    %v139 = vpop.xlane.xlu0 %138
    %v140 = vadd.f32 %v136, %v139
    %vm141 = vcmask 7168
    %142 = vst.msk [vmem:[#allocation5] sm:$0xff] %vm141, %v140
    %v143 = vld [vmem:[#allocation3] sm:$0xff]
    %144 = vmax.xlane.f32.xlu0 %v130
    %v145 = vpop.xlane.xlu0 %144
    %v146 = vmax.f32 %v143, %v145
    %v147 = vsub.f32 %v143, %v146
    %v148 = vmul.f32 %v147, 1.442695
    %v149 = vpow.pop %v148
    %v150 = vld [vmem:[#allocation4] sm:$0xff]
    %v151 = vmul.f32 %v149, %v150
    %153 = vset.pattern.permute.xlu0 0
    %154 = vperm.xlu0 %153, %v146
    %v155 = vpop.permute.xlu0 %154
    %v157 = vsub.f32 %v130, %v155
    %v158 = vmul.f32 %v157, 1.442695
    %v159 = vpow.pop %v158
    %160 = vadd.xlane.f32.xlu0 %v159
    %v161 = vpop.xlane.xlu0 %160
    %v162 = vadd.f32 %v151, %v161
    %163 = vst.msk [vmem:[#allocation4] sm:$0xff] %vm141, %v162
    %164 = vst.msk [vmem:[#allocation3] sm:$0xff] %vm141, %v146
    // Predicated region
    $region22: #{normface_forward.1} parent=1 // pred_check
      %p165 = pneg %p21
    $region23: #{normface_forward.1} parent=1 // pred_check_branch
      %167 = sbr.rel (%p165) target = $region25
    $region24: #{normface_forward.1} parent=1 // pred_region
      %v168 = vld [vmem:[#allocation3] sm:$0xff]
      %v169 = vld [vmem:[#allocation4] sm:$0xff]
      %v170 = vlog2.pop %v169
      %v171 = vmul.f32 %v170, 0.6931472
      %v172 = vadd.f32 %v168, %v171
      %v173 = vld [vmem:[#allocation5] sm:$0xff]
      %v174 = vsub.f32 %v172, %v173
      %175 = vst.msk [vmem:[%s5] sm:$0xff] %vm141, %v174
    $region25: #{normface_forward.1} parent=1 // pred_fallthru
      _
    // Predicated region
    $region26: #{normface_forward.1} parent=1 // pred_check
      _
    $region27: #{normface_forward.1} parent=1 // pred_check_branch
      %177 = sbr.rel (0) target = $region29
    $region28: #{normface_forward.1} parent=1 // pred_region
      %s179 = ssub.s32 128, 128
      %180 = vsyncadd [#allocation7], %s179
      %s182 = sshll.u32 [#allocation6], 4
      %s183 = int_to_ptr.vmem [resolvable:$true] %s182
      %185 = dma.vmem_to_hbm [thread:$0]  %s183, 128, %s4, [#allocation7]
    $region29: #{normface_forward.1} parent=1 // pred_fallthru
      _
    // Predicated region
    $region30: #{normface_forward.1} parent=1 // pred_check
      _
    $region31: #{normface_forward.1} parent=1 // pred_check_branch
      %187 = sbr.rel (0) target = $region33
    $region32: #{normface_forward.1} parent=1 // pred_region
      _
    $region33: #{normface_forward.1} parent=1 // pred_fallthru
      _
    // Predicated region
    $region34: #{normface_forward.1} parent=1 // pred_check
      _
    $region35: #{normface_forward.1} parent=1 // pred_check_branch
      %189 = sbr.rel (0) target = $region37
    $region36: #{normface_forward.1} parent=1 // pred_region
      %190 = dma.done [#allocation7], 128
    $region37: #{normface_forward.1} parent=1 // pred_fallthru
      _
    // Predicated region
    $region38: #{normface_forward.1} parent=1 // pred_check
      _
    $region39: #{normface_forward.1} parent=1 // pred_check_branch
      %192 = sbr.rel (0) target = $region41
    $region40: #{normface_forward.1} parent=1 // pred_region
      _
    $region41: #{normface_forward.1} parent=1 // pred_fallthru
      _
    %193 = vsyncpa [#allocation7], 1

</llo_original>
